<compile_context>
chip_gen: v7x
topology: tpu7x:2x2x1
jax: 0.10.0
libtpu: 0.0.40
codegen_flags: <defaults>
</compile_context>

<pallas_src>
import functools

import jax
import jax.numpy as jnp
from jax import lax
from jax.experimental import pallas as pl
from jax.experimental.pallas import tpu as pltpu


def _round_up(x, m):
    return ((x + m - 1) // m) * m


def _label_smoothing_kernel(pred_ref, tgt_ref, out_ref, *, confidence, smooth_val, n_valid):
    x = pred_ref[...].astype(jnp.float32)           # (tm, C)
    tgt = tgt_ref[...]                               # (tm, 1) int32
    tm, C = x.shape

    # Stable logsumexp pieces (exp -> EUP, reductions -> XLU).
    m = jnp.max(x, axis=-1, keepdims=True)                           # (tm, 1)
    lse = jnp.log(jnp.sum(jnp.exp(x - m), axis=-1, keepdims=True))   # (tm, 1)
    mlse = m + lse                                                    # (tm, 1)

    # Fused gather + weighted rowsum.  Weights sum to 1, so
    #   loss_row = sum_c(-w_c * (x_c - mlse)) = mlse - sum_c(w_c * x_c).
    cols = lax.broadcasted_iota(jnp.int32, (tm, C), 1)
    w = jnp.where(cols == tgt, jnp.float32(confidence), jnp.float32(smooth_val))
    wx = jnp.sum(w * x, axis=-1, keepdims=True)                       # (tm, 1)
    row_loss = mlse - wx                                              # (tm, 1)

    # Mask out rows beyond N in the (possibly partial) last tile.  Use a
    # select (not a multiply) so garbage/Inf/NaN in out-of-bounds rows can
    # never leak into the tile sum.
    i = pl.program_id(0)
    row_ids = i * tm + lax.broadcasted_iota(jnp.int32, (tm, 1), 0)
    row_loss = jnp.where(row_ids < n_valid, row_loss, 0.0)

    tile_sum = jnp.sum(row_loss)                                      # scalar
    out_ref[...] = jnp.broadcast_to(tile_sum.astype(jnp.float32), (1, 1, 128))


def label_smoothing_loss(pred, target, classes, smoothing=0.0, *, tile_m=None):
    """pred: (N, C) float, target: (N,) int. Returns scalar mean loss."""
    N, C = pred.shape
    assert C == classes

    confidence = 1.0 - smoothing
    smooth_val = (smoothing / (classes - 1)) if classes > 1 else 0.0

    itemsize = jnp.dtype(pred.dtype).itemsize

    # Generation-keyed VMEM budget: ~75% of physical VMEM, capped at 100 MiB.
    # (v7x: ~48 MiB of 64 MiB; v5e/v6e: ~96 MiB of 128 MiB.)
    try:
        vmem_cap = int(pltpu.get_tpu_info().vmem_capacity_bytes)
    except Exception:  # conservative fallback = v7x
        vmem_cap = 64 * 1024 * 1024
    vmem_limit = int(min(int(0.75 * vmem_cap), 100 * 1024 * 1024))

    # Per-row VMEM footprint: double-buffered pred tile (input dtype) plus
    # ~5 (tm, C)-shaped f32/i32 compute intermediates (f32 upcast, iota,
    # weights, weighted product, exp temp) plus the tiny target column.
    per_row_bytes = C * (2 * itemsize + 5 * 4) + 2 * 4
    headroom = 2 * 1024 * 1024  # Mosaic internal scratch / output blocks
    max_tm_by_vmem = max(8, ((vmem_limit - headroom) // per_row_bytes) // 8 * 8)

    # Bytes-driven default tile: target >= ~4 MiB of pred per grid step so
    # the ~0.35 us per-step overhead is amortized (small-C cases get big tm).
    if tile_m is None:
        target_bytes = 4 * 1024 * 1024
        tile_m = max(256, _round_up(-(-target_bytes // (C * itemsize)), 8))

    tm = min(int(tile_m), int(max_tm_by_vmem), _round_up(N, 8))
    tm = max(8, (tm // 8) * 8)

    num_tiles = pl.cdiv(N, tm)  # partial last tile handled in-kernel (no pad)

    tgt2d = target.astype(jnp.int32).reshape(N, 1)

    kernel = functools.partial(
        _label_smoothing_kernel,
        confidence=confidence,
        smooth_val=smooth_val,
        n_valid=N,
    )

    partials = pl.pallas_call(
        kernel,
        out_shape=jax.ShapeDtypeStruct((num_tiles, 1, 128), jnp.float32),
        grid_spec=pltpu.PrefetchScalarGridSpec(
            num_scalar_prefetch=0,
            grid=(num_tiles,),
            in_specs=[
                pl.BlockSpec((tm, C), lambda i: (i, 0)),
                pl.BlockSpec((tm, 1), lambda i: (i, 0)),
            ],
            out_specs=pl.BlockSpec((1, 1, 128), lambda i: (i, 0, 0)),
        ),
        compiler_params=pltpu.CompilerParams(
            dimension_semantics=("parallel",),
            vmem_limit_bytes=vmem_limit,
        ),
    )(pred, tgt2d)

    # Tiny final reduction outside the kernel; multiply by precomputed 1/N.
    return jnp.sum(partials[:, 0, 0]) * jnp.float32(1.0 / N)


def _reference(pred, target, classes, smoothing):
    logp = jax.nn.log_softmax(pred, axis=-1)
    confidence = 1.0 - smoothing
    smooth_val = smoothing / (classes - 1)
    true_dist = jnp.full_like(logp, smooth_val)
    true_dist = true_dist.at[jnp.arange(pred.shape[0]), target].set(confidence)
    return jnp.mean(jnp.sum(-true_dist * logp, axis=-1))


if __name__ == "__main__":
    N, C = 16, 32
    smoothing = 0.1

    key = jax.random.PRNGKey(0)
    k_pred, k_tgt = jax.random.split(key)
    pred = jax.random.normal(k_pred, (N, C), dtype=jnp.float32)
    target = jax.random.randint(k_tgt, (N,), 0, C, dtype=jnp.int32)

    loss = label_smoothing_loss(pred, target, classes=C, smoothing=smoothing)
    loss = jax.block_until_ready(loss)

    ref = _reference(pred, target, C, smoothing)
    assert jnp.allclose(loss, ref, rtol=1e-5, atol=1e-5), (loss, ref)

    # Also exercise a partial-last-tile case (N not a multiple of 8/tm).
    N2 = 13
    pred2 = jax.random.normal(jax.random.PRNGKey(1), (N2, C), dtype=jnp.float32)
    tgt2 = jax.random.randint(jax.random.PRNGKey(2), (N2,), 0, C, dtype=jnp.int32)
    loss2 = jax.block_until_ready(
        label_smoothing_loss(pred2, tgt2, classes=C, smoothing=smoothing))
    ref2 = _reference(pred2, tgt2, C, smoothing)
    assert jnp.allclose(loss2, ref2, rtol=1e-5, atol=1e-5), (loss2, ref2)

    print("KERNEL_OK")
</pallas_src>

<mosaic_0001>
module attributes {stable_mosaic.version = 11 : i64} {
  func.func @_label_smoothing_kernel(%arg0: i32, %arg1: memref<16x32xf32, #tpu.memory_space<vmem>>, %arg2: memref<16x1xi32, #tpu.memory_space<vmem>>, %arg3: memref<1x1x128xf32, #tpu.memory_space<vmem>>) attributes {dimension_semantics = [#tpu.dimension_semantics<parallel>], iteration_bounds = array<i64: 1>, scalar_prefetch = 0 : i64, scratch_operands = 0 : i64, tpu.core_type = #tpu.core_type<tc>, window_params = [{transform_indices = @transform_0, window_bounds = array<i64: 16, 32>}, {transform_indices = @transform_1, window_bounds = array<i64: 16, 1>}, {transform_indices = @transform_2, window_bounds = array<i64: 1, 1, 128>}]} {
    %c0 = arith.constant 0 : index
    %c0_0 = arith.constant 0 : index
    %0 = vector.load %arg1[%c0, %c0_0] : memref<16x32xf32, #tpu.memory_space<vmem>>, vector<16x32xf32>
    %c0_1 = arith.constant 0 : index
    %c0_2 = arith.constant 0 : index
    %1 = vector.load %arg2[%c0_1, %c0_2] : memref<16x1xi32, #tpu.memory_space<vmem>>, vector<16x1xi32>
    %cst = arith.constant dense<0xFF800000> : vector<16xf32>
    %2 = vector.multi_reduction <maximumf>, %0, %cst [1] : vector<16x32xf32> to vector<16xf32>
    %3 = vector.shape_cast %2 : vector<16xf32> to vector<16x1xf32>
    %4 = vector.broadcast %3 : vector<16x1xf32> to vector<16x32xf32>
    %5 = arith.subf %0, %4 : vector<16x32xf32>
    %6 = math.exp %5 : vector<16x32xf32>
    %cst_3 = arith.constant dense<0.000000e+00> : vector<16xf32>
    %7 = vector.multi_reduction <add>, %6, %cst_3 [1] : vector<16x32xf32> to vector<16xf32>
    %8 = vector.shape_cast %7 : vector<16xf32> to vector<16x1xf32>
    %9 = math.log %8 : vector<16x1xf32>
    %10 = arith.addf %3, %9 : vector<16x1xf32>
    %11 = tpu.iota {dimensions = array<i32: 1>} : vector<16x32xi32>
    %12 = vector.broadcast %1 : vector<16x1xi32> to vector<16x32xi32>
    %13 = arith.cmpi eq, %11, %12 : vector<16x32xi32>
    %cst_4 = arith.constant 0.899999976 : f32
    %cst_5 = arith.constant 0.0032258064 : f32
    %14 = vector.broadcast %cst_4 : f32 to vector<16x32xf32>
    %15 = vector.broadcast %cst_5 : f32 to vector<16x32xf32>
    %16 = arith.select %13, %14, %15 : vector<16x32xi1>, vector<16x32xf32>
    %17 = arith.mulf %16, %0 : vector<16x32xf32>
    %cst_6 = arith.constant dense<0.000000e+00> : vector<16xf32>
    %18 = vector.multi_reduction <add>, %17, %cst_6 [1] : vector<16x32xf32> to vector<16xf32>
    %19 = vector.shape_cast %18 : vector<16xf32> to vector<16x1xf32>
    %20 = arith.subf %10, %19 : vector<16x1xf32>
    %c16_i32 = arith.constant 16 : i32
    %21 = arith.muli %arg0, %c16_i32 : i32
    %22 = tpu.iota {dimensions = array<i32: 0>} : vector<16x1xi32>
    %23 = vector.broadcast %21 : i32 to vector<16x1xi32>
    %24 = arith.addi %23, %22 : vector<16x1xi32>
    %c16_i32_7 = arith.constant 16 : i32
    %25 = vector.broadcast %c16_i32_7 : i32 to vector<16x1xi32>
    %26 = arith.cmpi slt, %24, %25 : vector<16x1xi32>
    %cst_8 = arith.constant 0.000000e+00 : f32
    %27 = vector.broadcast %cst_8 : f32 to vector<16x1xf32>
    %28 = arith.select %26, %20, %27 : vector<16x1xi1>, vector<16x1xf32>
    %29 = vector.shape_cast %28 : vector<16x1xf32> to vector<1x16x1xf32>
    %cst_9 = arith.constant dense<0.000000e+00> : vector<1xf32>
    %30 = vector.multi_reduction <add>, %29, %cst_9 [1, 2] : vector<1x16x1xf32> to vector<1xf32>
    %31 = vector.shape_cast %30 : vector<1xf32> to vector<1x1x1xf32>
    %32 = vector.extract %31[0, 0, 0] : f32 from vector<1x1x1xf32>
    %33 = vector.broadcast %32 : f32 to vector<1x1x128xf32>
    %c0_10 = arith.constant 0 : index
    %c0_11 = arith.constant 0 : index
    %c0_12 = arith.constant 0 : index
    %34 = vector.load %arg3[%c0_10, %c0_11, %c0_12] : memref<1x1x128xf32, #tpu.memory_space<vmem>>, vector<1x1x128xf32>
    tpu.vector_store %arg3[%c0_10, %c0_11, %c0_12], %33 {strides = array<i32>} : memref<1x1x128xf32, #tpu.memory_space<vmem>>, vector<1x1x128xf32>,
    return
  }
  func.func @transform_0(%arg0: i32) -> (i32, i32) {
    %c0_i32 = arith.constant 0 : i32
    %c0_i32_0 = arith.constant 0 : i32
    return %arg0, %c0_i32 : i32, i32
  }
  func.func @transform_1(%arg0: i32) -> (i32, i32) {
    %c0_i32 = arith.constant 0 : i32
    %c0_i32_0 = arith.constant 0 : i32
    return %arg0, %c0_i32 : i32, i32
  }
  func.func @transform_2(%arg0: i32) -> (i32, i32, i32) {
    %c0_i32 = arith.constant 0 : i32
    %c0_i32_0 = arith.constant 0 : i32
    %c0_i32_1 = arith.constant 0 : i32
    return %arg0, %c0_i32, %c0_i32_0 : i32, i32, i32
  }
}

</mosaic_0001>

<llo_original>
// kernel: tpu_custom_call.1
$region0: #{tpu_custom_call.1}
  #allocation0 [shape = 'u32[]', space=smem, size = 0x4, offset = 0x4, fixed_abs, tag = 'smem constant byte address 0x4 - core index']
  #allocation1 [shape = 'u32[144,128]{1,0:T(1,128)}', space=vmem, size = 0x12000, scoped, tag = 'internal scratch']
  %s0 = inlined_call_operand.vmem [shape: f32[16,32], index: 0, kind: input, shape index: {}]
  %s1 = inlined_call_operand.vmem [shape: s32[16,1], index: 1, kind: input, shape index: {}]
  %s2 = inlined_call_operand.hbm [shape: f32[1,1,128], index: 2, kind: output, shape index: {}]
  %s3 = sld [smem:[#allocation0]]
  $region18: #{tpu_custom_call.1} parent=0
    _
  %s5 = ssub.s32 1, %s3
  %s6 = scalar_select 0, %s5, %s3
  $region1: #{tpu_custom_call.1} parent=0
    #allocation2 [shape = 'u8[512]{0}', space=vmem, size = 0x400, scoped, tag = 'output window, operand 0, single buffered']
    #allocation3 [shape = 's32[1]{0}', space=sflag, size = 0x4, scoped, tag = 'scoped memory for tpu_custom_call.1']
    %7 = vsyncpa [#allocation3], 0
    // Predicated region
    $region2: #{tpu_custom_call.1} parent=1 // pred_check
      _
    $region3: #{tpu_custom_call.1} parent=1 // pred_check_branch
      %9 = sbr.rel (0) target = $region5
    $region4: #{tpu_custom_call.1} parent=1 // pred_region
      _
    $region5: #{tpu_custom_call.1} parent=1 // pred_fallthru
      _
    // Predicated region
    $region6: #{tpu_custom_call.1} parent=1 // pred_check
      _
    $region7: #{tpu_custom_call.1} parent=1 // pred_check_branch
      %11 = sbr.rel (0) target = $region9
    $region8: #{tpu_custom_call.1} parent=1 // pred_region
      _
    $region9: #{tpu_custom_call.1} parent=1 // pred_fallthru
      _
    %v12 = vld [vmem:[%s0] sm:$0xff]
    %v13 = vld [vmem:[%s0 + $0x8] sm:$0xff]
    %v14 = vld [vmem:[%s1] sm:$0xff]
    %v15 = vld [vmem:[%s1 + $0x8] sm:$0xff]
    %vm16 = vcmask 261120
    %v17 = vsel %vm16, %v12, -inf
    %18 = vmax.xlane.f32.xlu0 %v17
    %v19 = vpop.xlane.xlu0 %18
    %v20 = vsel %vm16, %v13, -inf
    %21 = vmax.xlane.f32.xlu0 %v20
    %v22 = vpop.xlane.xlu0 %21
    %v23 = vsub.f32 %v12, %v19
    %v24 = vsub.f32 %v13, %v22
    %v25 = vmul.f32 %v23, 1.442695
    %v26 = vpow.pop %v25
    %v27 = vmul.f32 %v24, 1.442695
    %v28 = vpow.pop %v27
    %v29 = vsel %vm16, %v26, 0.0
    %30 = vadd.xlane.f32.xlu0 %v29
    %v31 = vpop.xlane.xlu0 %30
    %v32 = vsel %vm16, %v28, 0.0
    %33 = vadd.xlane.f32.xlu0 %v32
    %v34 = vpop.xlane.xlu0 %33
    %v35 = vlog2.pop %v31
    %v36 = vmul.f32 %v35, 0.6931472
    %v37 = vlog2.pop %v34
    %v38 = vmul.f32 %v37, 0.6931472
    %v39 = vadd.f32 %v19, %v36
    %v40 = vadd.f32 %v22, %v38
    %v41 = vlaneseq
    %v42 = vand.u32 %v41, 127
    %43 = vset.pattern.permute.xlu0 0
    %44 = vperm.xlu0 %43, %v14
    %v45 = vpop.permute.xlu0 %44
    %46 = vset.pattern.permute.xlu0 0
    %47 = vperm.xlu0 %46, %v15
    %v48 = vpop.permute.xlu0 %47
    %vm49 = vcmp.eq.s32.totalorder %v42, %v45
    %vm50 = vcmp.eq.s32.totalorder %v42, %v48
    %v51 = vsel %vm49, 0.9, 0.0032258064
    %v52 = vsel %vm50, 0.9, 0.0032258064
    %v53 = vmul.f32 %v51, %v12
    %v54 = vmul.f32 %v52, %v13
    %v55 = vsel %vm16, %v53, 0.0
    %56 = vadd.xlane.f32.xlu0 %v55
    %v57 = vpop.xlane.xlu0 %56
    %v58 = vsel %vm16, %v54, 0.0
    %59 = vadd.xlane.f32.xlu0 %v58
    %v60 = vpop.xlane.xlu0 %59
    %v61 = vsub.f32 %v39, %v57
    %v62 = vsub.f32 %v40, %v60
    %s63 = smul.u32 0, 16
    %v64 = vlaneseq
    %v65 = vshrl.u32 %v64, 7
    %v66 = vadd.s32 %v65, 8
    %v67 = vstv %s63
    %v68 = vadd.s32 %v67, %v65
    %v69 = vadd.s32 %v67, %v66
    %vm70 = vcmp.lt.s32.totalorder %v68, 16
    %vm71 = vcmp.lt.s32.totalorder %v69, 16
    %v72 = vsel %vm70, %v61, 0.0
    %v73 = vsel %vm71, %v62, 0.0
    %vm74 = vcmask 7168
    %v75 = vsel %vm74, %v72, 0.0
    %v76 = vsel %vm74, %v73, 0.0
    %v77 = vadd.f32 %v75, %v76
    %78 = vadd.xlane.f32.xlu0 %v77
    %v79 = vpop.xlane.xlu0 %78
    %v80 = vrot.slane %v79, 4
    %v81 = vadd.f32 %v79, %v80
    %v82 = vrot.slane %v81, 2
    %v83 = vadd.f32 %v81, %v82
    %v84 = vrot.slane %v83, 1
    %v85 = vadd.f32 %v83, %v84
    %s86 = vtos %v85
    %v87 = vstv %s86
    %88 = vst [vmem:[#allocation2] sm:$0x1] %v87
    // Predicated region
    $region10: #{tpu_custom_call.1} parent=1 // pred_check
      _
    $region11: #{tpu_custom_call.1} parent=1 // pred_check_branch
      %90 = sbr.rel (0) target = $region13
    $region12: #{tpu_custom_call.1} parent=1 // pred_region
      %s92 = ssub.s32 16, 16
      %93 = vsyncadd [#allocation3], %s92
      %s95 = sshll.u32 [#allocation2], 4
      %s96 = int_to_ptr.vmem [resolvable:$true] %s95
      %98 = dma.vmem_to_hbm [thread:$0]  %s96, 16, %s2, [#allocation3]
    $region13: #{tpu_custom_call.1} parent=1 // pred_fallthru
      _
    // Predicated region
    $region14: #{tpu_custom_call.1} parent=1 // pred_check
      _
    $region15: #{tpu_custom_call.1} parent=1 // pred_check_branch
      %100 = sbr.rel (0) target = $region17
    $region16: #{tpu_custom_call.1} parent=1 // pred_region
      %101 = dma.done [#allocation3], 16
    $region17: #{tpu_custom_call.1} parent=1 // pred_fallthru
      _
    %102 = vsyncpa [#allocation3], 1

</llo_original>
